<compile_context>
chip_gen: v7x
topology: tpu7x:2x2x1
jax: 0.10.0
libtpu: 0.0.40
codegen_flags: <defaults>
</compile_context>

<pallas_src>
import functools

import jax
import jax.numpy as jnp
import numpy as np
from jax.experimental import pallas as pl
from jax.experimental.pallas import tpu as pltpu


def _resize_kernel(x_ref, r_ref, ct_ref, o_ref):
    """Resize TILE_N (H_in, W_in) planes to (H_out, W_out) via one-hot matmuls."""
    tile_n, h_out, w_out = o_ref.shape
    h_in, w_in = x_ref.shape[1], x_ref.shape[2]
    cdt = r_ref.dtype                                   # compute dtype (bf16 or f32)

    x = x_ref[...].astype(cdt)                          # (n, H_in, W_in), cast in VMEM
    r_b = jnp.broadcast_to(r_ref[...], (tile_n, h_out, h_in))   # (n, H_out, H_in)
    ct_b = jnp.broadcast_to(ct_ref[...], (tile_n, w_in, w_out))  # (n, W_in, W_out)

    # Row gather first (shrinks the column matmul when downsampling).
    y = jnp.einsum("noh,nhw->now", r_b, x,
                   preferred_element_type=jnp.float32)  # (n, H_out, W_in) f32
    y = y.astype(cdt)                                   # exact: one-hot selection
    z = jnp.einsum("now,nwv->nov", y, ct_b,
                   preferred_element_type=jnp.float32)  # (n, H_out, W_out) f32
    o_ref[...] = z.astype(o_ref.dtype)


def _nearest_src_indices_np(out_size: int, in_size: int) -> np.ndarray:
    # PyTorch nearest (recompute_scale_factor=True): src = floor(dst * in/out)
    dst = np.arange(out_size)
    return ((dst * in_size) // out_size).astype(np.int32)


def _pick_tile_n(n: int, per_plane_bytes: int,
                 budget_bytes: int = 10 * 1024 * 1024, cap: int = 256) -> int:
    """Pick how many planes to process per grid step from a VMEM budget."""
    tile = max(1, min(cap, budget_bytes // max(per_plane_bytes, 1)))
    tile = min(tile, n)
    # v7x has 2 TensorCores: keep >=2 grid steps when blocks are already large.
    if tile >= n >= 2 and per_plane_bytes * ((n + 1) // 2) >= (1 << 20):
        tile = (n + 1) // 2
    return int(tile)


@functools.partial(jax.jit,
                   static_argnames=("h_out", "w_out", "tile_n", "compute_dtype"))
def _resize_pallas(x, *, h_out, w_out, tile_n, compute_dtype):
    n, h_in, w_in = x.shape
    cdt = compute_dtype

    # One-hot selection matrices, built on device (exact 0/1 in any float dtype).
    row_src = (jnp.arange(h_out, dtype=jnp.int32) * h_in) // h_out
    col_src = (jnp.arange(w_out, dtype=jnp.int32) * w_in) // w_out
    R = jax.nn.one_hot(row_src, h_in, dtype=cdt)        # (H_out, H_in)
    Ct = jax.nn.one_hot(col_src, w_in, dtype=cdt).T     # (W_in, W_out)

    grid = (n // tile_n,)
    return pl.pallas_call(
        _resize_kernel,
        out_shape=jax.ShapeDtypeStruct((n, h_out, w_out), x.dtype),
        grid_spec=pltpu.PrefetchScalarGridSpec(
            num_scalar_prefetch=0,
            grid=grid,
            in_specs=[
                pl.BlockSpec((tile_n, h_in, w_in), lambda i: (i, 0, 0)),
                pl.BlockSpec((h_out, h_in), lambda i: (0, 0)),
                pl.BlockSpec((w_in, w_out), lambda i: (0, 0)),
            ],
            out_specs=pl.BlockSpec((tile_n, h_out, w_out), lambda i: (i, 0, 0)),
        ),
        compiler_params=pltpu.CompilerParams(
            dimension_semantics=("parallel",),
            vmem_limit_bytes=32 * 1024 * 1024,
        ),
    )(x, R, Ct)


class Resize:
    """JAX/Pallas port of the Resize noise layer (nearest interpolation)."""

    def __init__(self, resize_ratio_range, interpolation_method="nearest"):
        assert interpolation_method == "nearest", "only 'nearest' is implemented"
        self.resize_ratio_min = float(resize_ratio_range[0])
        self.resize_ratio_max = float(resize_ratio_range[1])

    def forward(self, noised_and_cover, rng=None):
        if rng is None:
            rng = np.random.default_rng()
        noised = noised_and_cover[0]                    # (B, C, H, W), NCHW
        b, c, h_in, w_in = noised.shape

        # Random ratio on host (matches original np.random.rand; output shape
        # is data-dependent so it must be resolved before tracing).
        ratio = float(rng.random()) * (self.resize_ratio_max -
                                       self.resize_ratio_min) + self.resize_ratio_min
        h_out = max(1, int(np.floor(h_in * ratio)))
        w_out = max(1, int(np.floor(w_in * ratio)))

        # Compute dtype: keep input precision for floats (one-hot matmuls are
        # exact); integers go through f32 (exact for |x| < 2**24).
        in_dt = np.dtype(noised.dtype)
        if in_dt == np.dtype(jnp.bfloat16) or in_dt == np.dtype(np.float32):
            compute_dtype = in_dt
        else:
            compute_dtype = np.dtype(np.float32)

        n = b * c
        in_b = in_dt.itemsize
        c_b = compute_dtype.itemsize
        per_plane = (2 * h_in * w_in * in_b            # double-buffered input block
                     + 2 * h_out * w_out * in_b        # double-buffered output block
                     + h_in * w_in * c_b               # x cast to compute dtype
                     + h_out * w_in * (4 + c_b)        # row-gathered intermediate
                     + h_out * w_out * 4               # f32 result of second matmul
                     + h_out * h_in * c_b              # broadcast R
                     + w_in * w_out * c_b)             # broadcast Ct
        tile_n = _pick_tile_n(n, per_plane)

        x_flat = noised.reshape(n, h_in, w_in)          # no dtype pre-cast
        n_pad = -(-n // tile_n) * tile_n
        if n_pad != n:
            x_flat = jnp.pad(x_flat, ((0, n_pad - n), (0, 0), (0, 0)))

        y_flat = _resize_pallas(x_flat, h_out=h_out, w_out=w_out,
                                tile_n=tile_n, compute_dtype=compute_dtype)
        y = y_flat[:n].reshape(b, c, h_out, w_out)

        noised_and_cover[0] = y
        return noised_and_cover


if __name__ == "__main__":
    key = jax.random.PRNGKey(0)
    k_img, k_cover = jax.random.split(key)

    B, C, H, W = 2, 4, 16, 16
    noised = jax.random.normal(k_img, (B, C, H, W), dtype=jnp.float32)
    cover = jax.random.normal(k_cover, (B, C, H, W), dtype=jnp.float32)

    layer = Resize(resize_ratio_range=(0.5, 1.0), interpolation_method="nearest")
    rng = np.random.default_rng(0)                      # deterministic ratio
    out = layer.forward([noised, cover], rng=rng)
    resized = jax.block_until_ready(out[0])

    # Cross-check against a pure-numpy nearest-neighbor reference.
    h_out, w_out = resized.shape[2], resized.shape[3]
    rows = _nearest_src_indices_np(h_out, H)
    cols = _nearest_src_indices_np(w_out, W)
    ref = np.asarray(noised)[:, :, rows, :][:, :, :, cols]
    np.testing.assert_allclose(np.asarray(resized), ref, rtol=1e-6, atol=1e-6)

    print("KERNEL_OK")
</pallas_src>

<mosaic_0001>
module attributes {stable_mosaic.version = 11 : i64} {
  func.func @_resize_kernel(%arg0: i32, %arg1: memref<8x16x16xf32, #tpu.memory_space<vmem>>, %arg2: memref<13x16xf32, #tpu.memory_space<vmem>>, %arg3: memref<16x13xf32, #tpu.memory_space<vmem>>, %arg4: memref<8x13x13xf32, #tpu.memory_space<vmem>>) attributes {dimension_semantics = [#tpu.dimension_semantics<parallel>], iteration_bounds = array<i64: 1>, scalar_prefetch = 0 : i64, scratch_operands = 0 : i64, tpu.core_type = #tpu.core_type<tc>, window_params = [{transform_indices = @transform_0, window_bounds = array<i64: 8, 16, 16>}, {pipeline_mode = #tpu.pipeline_mode<synchronous>, transform_indices = @transform_1, window_bounds = array<i64: 13, 16>}, {pipeline_mode = #tpu.pipeline_mode<synchronous>, transform_indices = @transform_2, window_bounds = array<i64: 16, 13>}, {transform_indices = @transform_3, window_bounds = array<i64: 8, 13, 13>}]} {
    %c0 = arith.constant 0 : index
    %c0_0 = arith.constant 0 : index
    %c0_1 = arith.constant 0 : index
    %0 = vector.load %arg1[%c0, %c0_0, %c0_1] : memref<8x16x16xf32, #tpu.memory_space<vmem>>, vector<8x16x16xf32>
    %c0_2 = arith.constant 0 : index
    %c0_3 = arith.constant 0 : index
    %1 = vector.load %arg2[%c0_2, %c0_3] : memref<13x16xf32, #tpu.memory_space<vmem>>, vector<13x16xf32>
    %2 = vector.shape_cast %1 : vector<13x16xf32> to vector<1x13x16xf32>
    %3 = vector.broadcast %2 : vector<1x13x16xf32> to vector<8x13x16xf32>
    %c0_4 = arith.constant 0 : index
    %c0_5 = arith.constant 0 : index
    %4 = vector.load %arg3[%c0_4, %c0_5] : memref<16x13xf32, #tpu.memory_space<vmem>>, vector<16x13xf32>
    %5 = vector.shape_cast %4 : vector<16x13xf32> to vector<1x16x13xf32>
    %6 = vector.broadcast %5 : vector<1x16x13xf32> to vector<8x16x13xf32>
    "tpu.trace_start"() <{level = 10 : i32, message = "noh,nhw->now"}> : () -> ()
    %cst = arith.constant dense<0.000000e+00> : vector<8x13x16xf32>
    %7 = tpu.matmul %3, %0, %cst {dimension_numbers = #tpu.dot_dimension_numbers<[2], [1], [1], [2], [0, 0, 0, 1, 1, 2], [0], [0]>} : vector<8x13x16xf32>, vector<8x16x16xf32>, vector<8x13x16xf32> -> vector<8x13x16xf32>
    "tpu.trace_stop"() : () -> ()
    "tpu.trace_start"() <{level = 10 : i32, message = "now,nwv->nov"}> : () -> ()
    %cst_6 = arith.constant dense<0.000000e+00> : vector<8x13x13xf32>
    %8 = tpu.matmul %7, %6, %cst_6 {dimension_numbers = #tpu.dot_dimension_numbers<[2], [1], [1], [2], [0, 0, 0, 1, 1, 2], [0], [0]>} : vector<8x13x16xf32>, vector<8x16x13xf32>, vector<8x13x13xf32> -> vector<8x13x13xf32>
    "tpu.trace_stop"() : () -> ()
    %c0_7 = arith.constant 0 : index
    %c0_8 = arith.constant 0 : index
    %c0_9 = arith.constant 0 : index
    %9 = vector.load %arg4[%c0_7, %c0_8, %c0_9] : memref<8x13x13xf32, #tpu.memory_space<vmem>>, vector<8x13x13xf32>
    tpu.vector_store %arg4[%c0_7, %c0_8, %c0_9], %8 {strides = array<i32>} : memref<8x13x13xf32, #tpu.memory_space<vmem>>, vector<8x13x13xf32>,
    return
  }
  func.func @transform_0(%arg0: i32) -> (i32, i32, i32) {
    %c0_i32 = arith.constant 0 : i32
    %c0_i32_0 = arith.constant 0 : i32
    %c0_i32_1 = arith.constant 0 : i32
    return %arg0, %c0_i32, %c0_i32_0 : i32, i32, i32
  }
  func.func @transform_1(%arg0: i32) -> (i32, i32) {
    %c0_i32 = arith.constant 0 : i32
    %c0_i32_0 = arith.constant 0 : i32
    %c0_i32_1 = arith.constant 0 : i32
    return %c0_i32, %c0_i32_0 : i32, i32
  }
  func.func @transform_2(%arg0: i32) -> (i32, i32) {
    %c0_i32 = arith.constant 0 : i32
    %c0_i32_0 = arith.constant 0 : i32
    %c0_i32_1 = arith.constant 0 : i32
    return %c0_i32, %c0_i32_0 : i32, i32
  }
  func.func @transform_3(%arg0: i32) -> (i32, i32, i32) {
    %c0_i32 = arith.constant 0 : i32
    %c0_i32_0 = arith.constant 0 : i32
    %c0_i32_1 = arith.constant 0 : i32
    return %arg0, %c0_i32, %c0_i32_0 : i32, i32, i32
  }
}

</mosaic_0001>

<llo_original>
// kernel: _resize_pallas.1
$region0: #{_resize_pallas.1}
  #allocation0 [shape = 'u32[]', space=smem, size = 0x4, offset = 0x4, fixed_abs, tag = 'smem constant byte address 0x4 - core index']
  #allocation1 [shape = 'u32[144,128]{1,0:T(1,128)}', space=vmem, size = 0x12000, scoped, tag = 'internal scratch']
  %s0 = inlined_call_operand.hbm [shape: f32[8,16,16], index: 0, kind: input, shape index: {}]
  %s1 = inlined_call_operand.vmem [shape: f32[13,16], index: 1, kind: input, shape index: {}]
  %s2 = inlined_call_operand.vmem [shape: f32[16,13], index: 2, kind: input, shape index: {}]
  %s3 = inlined_call_operand.vmem [shape: f32[8,13,13], index: 3, kind: output, shape index: {}]
  %s4 = sld [smem:[#allocation0]]
  $region26: #{_resize_pallas.1} parent=0
    _
  %s6 = ssub.s32 1, %s4
  %s7 = scalar_select 0, %s6, %s4
  $region1: #{_resize_pallas.1} parent=0
    #allocation2 [shape = 'u8[65536]{0}', space=vmem, size = 0x10000, scoped, tag = 'input window, operand 0, single buffered']
    #allocation3 [shape = 's32[1]{0}', space=sflag, size = 0x4, scoped, tag = 'scoped memory for _resize_pallas.1']
    %8 = vsyncpa [#allocation3], 0
    // Predicated region
    $region2: #{_resize_pallas.1} parent=1 // pred_check
      _
    $region3: #{_resize_pallas.1} parent=1 // pred_check_branch
      %10 = sbr.rel (0) target = $region5
    $region4: #{_resize_pallas.1} parent=1 // pred_region
      %s12 = ssub.s32 2048, 2048
      %13 = vsyncadd [#allocation3], %s12
      %s14 = sshll.u32 [#allocation2], 4
      %s15 = int_to_ptr.vmem [resolvable:$true] %s14
      %20 = dma.hbm_to_vmem [thread:$0]  %s0, 2048, %s15, [#allocation3], 128, 128, 8
    $region5: #{_resize_pallas.1} parent=1 // pred_fallthru
      _
    // Predicated region
    $region6: #{_resize_pallas.1} parent=1 // pred_check
      _
    $region7: #{_resize_pallas.1} parent=1 // pred_check_branch
      %22 = sbr.rel (0) target = $region9
    $region8: #{_resize_pallas.1} parent=1 // pred_region
      _
    $region9: #{_resize_pallas.1} parent=1 // pred_fallthru
      _
    // Predicated region
    $region10: #{_resize_pallas.1} parent=1 // pred_check
      _
    $region11: #{_resize_pallas.1} parent=1 // pred_check_branch
      %24 = sbr.rel (0) target = $region13
    $region12: #{_resize_pallas.1} parent=1 // pred_region
      _
    $region13: #{_resize_pallas.1} parent=1 // pred_fallthru
      _
    // Predicated region
    $region14: #{_resize_pallas.1} parent=1 // pred_check
      _
    $region15: #{_resize_pallas.1} parent=1 // pred_check_branch
      %26 = sbr.rel (0) target = $region17
    $region16: #{_resize_pallas.1} parent=1 // pred_region
      %27 = dma.done [#allocation3], 2048
    $region17: #{_resize_pallas.1} parent=1 // pred_fallthru
      _
    %v28 = vld [vmem:[#allocation2] sm:$0xff]
    %v29 = vld [vmem:[#allocation2 + $0x8] sm:$0xff]
    %v30 = vld [vmem:[#allocation2 + $0x10] sm:$0xff]
    %v31 = vld [vmem:[#allocation2 + $0x18] sm:$0xff]
    %v32 = vld [vmem:[#allocation2 + $0x20] sm:$0xff]
    %v33 = vld [vmem:[#allocation2 + $0x28] sm:$0xff]
    %v34 = vld [vmem:[#allocation2 + $0x30] sm:$0xff]
    %v35 = vld [vmem:[#allocation2 + $0x38] sm:$0xff]
    %v36 = vld [vmem:[#allocation2 + $0x40] sm:$0xff]
    %v37 = vld [vmem:[#allocation2 + $0x48] sm:$0xff]
    %v38 = vld [vmem:[#allocation2 + $0x50] sm:$0xff]
    %v39 = vld [vmem:[#allocation2 + $0x58] sm:$0xff]
    %v40 = vld [vmem:[#allocation2 + $0x60] sm:$0xff]
    %v41 = vld [vmem:[#allocation2 + $0x68] sm:$0xff]
    %v42 = vld [vmem:[#allocation2 + $0x70] sm:$0xff]
    %v43 = vld [vmem:[#allocation2 + $0x78] sm:$0xff]
    %v44 = vld [vmem:[%s1] sm:$0xff]
    %v45 = vld [vmem:[%s1 + $0x8] sm:$0x1f]
    %v46 = vld [vmem:[%s2] sm:$0xff]
    %v47 = vld [vmem:[%s2 + $0x8] sm:$0xff]
    %vm48 = vcmask 130048
    %v50 = vsel %vm48, %v44, 0
    %v53 = vsel %vm48, %v45, 0
    %55 = vmatprep.subr.mxu0 0.0
    %56 = vmatpush1.msra.mxu0 %v28
    %57 = vmatprep.subr.mxu0 0.0
    %58 = vmatpush1.msra.mxu0 %v29
    %59 = vmatprep.subr.mxu0 0.0
    %60 = vmatpush1.msra.mxu0 0.0
    %61 = vmatprep.subr.mxu0 0.0
    %62 = vmatpush1.msra.mxu0 0.0
    %63 = vmatprep.subr.mxu0 0.0
    %64 = vmatpush1.msra.mxu0 0.0
    %65 = vmatprep.subr.mxu0 0.0
    %66 = vmatpush1.msra.mxu0 0.0
    %67 = vmatprep.subr.mxu0 0.0
    %68 = vmatpush1.msra.mxu0 0.0
    %69 = vmatprep.subr.mxu0 0.0
    %70 = vmatpush1.msra.mxu0 0.0
    %71 = vmatprep.subr.mxu0 0.0
    %72 = vmatpush1.msra.mxu0 0.0
    %73 = vmatprep.subr.mxu0 0.0
    %74 = vmatpush1.msra.mxu0 0.0
    %75 = vmatprep.subr.mxu0 0.0
    %76 = vmatpush1.msra.mxu0 0.0
    %77 = vmatprep.subr.mxu0 0.0
    %78 = vmatpush1.msra.mxu0 0.0
    %79 = vmatprep.subr.mxu0 0.0
    %80 = vmatpush1.msra.mxu0 0.0
    %81 = vmatprep.subr.mxu0 0.0
    %82 = vmatpush1.msra.mxu0 0.0
    %83 = vmatprep.subr.mxu0 0.0
    %84 = vmatpush1.msra.mxu0 0.0
    %85 = vmatprep.subr.mxu0 0.0
    %86 = vmatpush1.msra.mxu0 0.0
    %87 = vmatprep.subr.mxu0 0.0
    %88 = vmatpush1.msra.mxu0 0.0
    %89 = vmatprep.subr.mxu0 0.0
    %90 = vmatpush1.msra.mxu0 0.0
    %91 = vmatprep.subr.mxu0 0.0
    %92 = vmatpush1.msra.mxu0 0.0
    %93 = vmatprep.subr.mxu0 0.0
    %94 = vmatpush1.msra.mxu0 0.0
    %95 = vmatprep.subr.mxu0 0.0
    %96 = vmatpush1.msra.mxu0 0.0
    %97 = vmatprep.subr.mxu0 0.0
    %98 = vmatpush1.msra.mxu0 0.0
    %99 = vmatprep.subr.mxu0 0.0
    %100 = vmatpush1.msra.mxu0 0.0
    %101 = vmatprep.subr.mxu0 0.0
    %102 = vmatpush1.msra.mxu0 0.0
    %103 = vmatprep.subr.mxu0 0.0
    %104 = vmatpush1.msra.mxu0 0.0
    %105 = vmatprep.subr.mxu0 0.0
    %106 = vmatpush1.msra.mxu0 0.0
    %107 = vmatprep.subr.mxu0 0.0
    %108 = vmatpush1.msra.mxu0 0.0
    %109 = vmatprep.subr.mxu0 0.0
    %110 = vmatpush1.msra.mxu0 0.0
    %111 = vmatprep.subr.mxu0 0.0
    %112 = vmatpush1.msra.mxu0 0.0
    %113 = vmatprep.subr.mxu0 0.0
    %114 = vmatpush1.msra.mxu0 0.0
    %115 = vmatprep.subr.mxu0 0.0
    %116 = vmatpush1.msra.mxu0 0.0
    %117 = vmatprep.subr.mxu0 0.0
    %118 = vmatpush1.msra.mxu0 0.0
    %119 = vmatprep.mubr.f32.mxu0 0.0
    %120 = vmatmul.mubr.f32.gmra.mrb[0].mxu0 %v50
    %v121 = vpop.f32.mrb[0].mxu0
    %v122 = vadd.f32 0.0, %v121
    %v123 = vpop.f32.mrb[0].mxu0
    %124 = vmatprep.mubr.f32.mxu0 0.0
    %125 = vmatmul.mubr.f32.gmra.mrb[0].mxu0 %v53
    %v126 = vpop.f32.mrb[0].mxu0
    %v127 = vadd.f32 0.0, %v126
    %v128 = vpop.f32.mrb[0].mxu0
    %129 = vdwg.mxu0
    %130 = vmatprep.subr.mxu0 0.0
    %131 = vmatpush1.msra.mxu0 %v30
    %132 = vmatprep.subr.mxu0 0.0
    %133 = vmatpush1.msra.mxu0 %v31
    %134 = vmatprep.subr.mxu0 0.0
    %135 = vmatpush1.msra.mxu0 0.0
    %136 = vmatprep.subr.mxu0 0.0
    %137 = vmatpush1.msra.mxu0 0.0
    %138 = vmatprep.subr.mxu0 0.0
    %139 = vmatpush1.msra.mxu0 0.0
    %140 = vmatprep.subr.mxu0 0.0
    %141 = vmatpush1.msra.mxu0 0.0
    %142 = vmatprep.subr.mxu0 0.0
    %143 = vmatpush1.msra.mxu0 0.0
    %144 = vmatprep.subr.mxu0 0.0
    %145 = vmatpush1.msra.mxu0 0.0
    %146 = vmatprep.subr.mxu0 0.0
    %147 = vmatpush1.msra.mxu0 0.0
    %148 = vmatprep.subr.mxu0 0.0
    %149 = vmatpush1.msra.mxu0 0.0
    %150 = vmatprep.subr.mxu0 0.0
    %151 = vmatpush1.msra.mxu0 0.0
    %152 = vmatprep.subr.mxu0 0.0
    %153 = vmatpush1.msra.mxu0 0.0
    %154 = vmatprep.subr.mxu0 0.0
    %155 = vmatpush1.msra.mxu0 0.0
    %156 = vmatprep.subr.mxu0 0.0
    %157 = vmatpush1.msra.mxu0 0.0
    %158 = vmatprep.subr.mxu0 0.0
    %159 = vmatpush1.msra.mxu0 0.0
    %160 = vmatprep.subr.mxu0 0.0
    %161 = vmatpush1.msra.mxu0 0.0
    %162 = vmatprep.subr.mxu0 0.0
    %163 = vmatpush1.msra.mxu0 0.0
    %164 = vmatprep.subr.mxu0 0.0
    %165 = vmatpush1.msra.mxu0 0.0
    %166 = vmatprep.subr.mxu0 0.0
    %167 = vmatpush1.msra.mxu0 0.0
    %168 = vmatprep.subr.mxu0 0.0
    %169 = vmatpush1.msra.mxu0 0.0
    %170 = vmatprep.subr.mxu0 0.0
    %171 = vmatpush1.msra.mxu0 0.0
    %172 = vmatprep.subr.mxu0 0.0
    %173 = vmatpush1.msra.mxu0 0.0
    %174 = vmatprep.subr.mxu0 0.0
    %175 = vmatpush1.msra.mxu0 0.0
    %176 = vmatprep.subr.mxu0 0.0
    %177 = vmatpush1.msra.mxu0 0.0
    %178 = vmatprep.subr.mxu0 0.0
    %179 = vmatpush1.msra.mxu0 0.0
    %180 = vmatprep.subr.mxu0 0.0
    %181 = vmatpush1.msra.mxu0 0.0
    %182 = vmatprep.subr.mxu0 0.0
    %183 = vmatpush1.msra.mxu0 0.0
    %184 = vmatprep.subr.mxu0 0.0
    %185 = vmatpush1.msra.mxu0 0.0
    %186 = vmatprep.subr.mxu0 0.0
    %187 = vmatpush1.msra.mxu0 0.0
    %188 = vmatprep.subr.mxu0 0.0
    %189 = vmatpush1.msra.mxu0 0.0
    %190 = vmatprep.subr.mxu0 0.0
    %191 = vmatpush1.msra.mxu0 0.0
    %192 = vmatprep.subr.mxu0 0.0
    %193 = vmatpush1.msra.mxu0 0.0
    %194 = vmatprep.mubr.f32.mxu0 0.0
    %195 = vmatmul.mubr.f32.gmra.mrb[0].mxu0 %v50
    %v196 = vpop.f32.mrb[0].mxu0
    %v197 = vadd.f32 0.0, %v196
    %v198 = vpop.f32.mrb[0].mxu0
    %199 = vmatprep.mubr.f32.mxu0 0.0
    %200 = vmatmul.mubr.f32.gmra.mrb[0].mxu0 %v53
    %v201 = vpop.f32.mrb[0].mxu0
    %v202 = vadd.f32 0.0, %v201
    %v203 = vpop.f32.mrb[0].mxu0
    %204 = vdwg.mxu0
    %205 = vmatprep.subr.mxu0 0.0
    %206 = vmatpush1.msra.mxu0 %v32
    %207 = vmatprep.subr.mxu0 0.0
    %208 = vmatpush1.msra.mxu0 %v33
    %209 = vmatprep.subr.mxu0 0.0
    %210 = vmatpush1.msra.mxu0 0.0
    %211 = vmatprep.subr.mxu0 0.0
    %212 = vmatpush1.msra.mxu0 0.0
    %213 = vmatprep.subr.mxu0 0.0
    %214 = vmatpush1.msra.mxu0 0.0
    %215 = vmatprep.subr.mxu0 0.0
    %216 = vmatpush1.msra.mxu0 0.0
    %217 = vmatprep.subr.mxu0 0.0
    %218 = vmatpush1.msra.mxu0 0.0
    %219 = vmatprep.subr.mxu0 0.0
    %220 = vmatpush1.msra.mxu0 0.0
    %221 = vmatprep.subr.mxu0 0.0
    %222 = vmatpush1.msra.mxu0 0.0
    %223 = vmatprep.subr.mxu0 0.0
    %224 = vmatpush1.msra.mxu0 0.0
    %225 = vmatprep.subr.mxu0 0.0
    %226 = vmatpush1.msra.mxu0 0.0
    %227 = vmatprep.subr.mxu0 0.0
    %228 = vmatpush1.msra.mxu0 0.0
    %229 = vmatprep.subr.mxu0 0.0
    %230 = vmatpush1.msra.mxu0 0.0
    %231 = vmatprep.subr.mxu0 0.0
    %232 = vmatpush1.msra.mxu0 0.0
    %233 = vmatprep.subr.mxu0 0.0
    %234 = vmatpush1.msra.mxu0 0.0
    %235 = vmatprep.subr.mxu0 0.0
    %236 = vmatpush1.msra.mxu0 0.0
    %237 = vmatprep.subr.mxu0 0.0
    %238 = vmatpush1.msra.mxu0 0.0
    %239 = vmatprep.subr.mxu0 0.0
    %240 = vmatpush1.msra.mxu0 0.0
    %241 = vmatprep.subr.mxu0 0.0
    %242 = vmatpush1.msra.mxu0 0.0
    %243 = vmatprep.subr.mxu0 0.0
    %244 = vmatpush1.msra.mxu0 0.0
    %245 = vmatprep.subr.mxu0 0.0
    %246 = vmatpush1.msra.mxu0 0.0
    %247 = vmatprep.subr.mxu0 0.0
    %248 = vmatpush1.msra.mxu0 0.0
    %249 = vmatprep.subr.mxu0 0.0
    %250 = vmatpush1.msra.mxu0 0.0
    %251 = vmatprep.subr.mxu0 0.0
    %252 = vmatpush1.msra.mxu0 0.0
    %253 = vmatprep.subr.mxu0 0.0
    %254 = vmatpush1.msra.mxu0 0.0
    %255 = vmatprep.subr.mxu0 0.0
    %256 = vmatpush1.msra.mxu0 0.0
    %257 = vmatprep.subr.mxu0 0.0
    %258 = vmatpush1.msra.mxu0 0.0
    %259 = vmatprep.subr.mxu0 0.0
    %260 = vmatpush1.msra.mxu0 0.0
    %261 = vmatprep.subr.mxu0 0.0
    %262 = vmatpush1.msra.mxu0 0.0
    %263 = vmatprep.subr.mxu0 0.0
    %264 = vmatpush1.msra.mxu0 0.0
    %265 = vmatprep.subr.mxu0 0.0
    %266 = vmatpush1.msra.mxu0 0.0
    %267 = vmatprep.subr.mxu0 0.0
    %268 = vmatpush1.msra.mxu0 0.0
    %269 = vmatprep.mubr.f32.mxu0 0.0
    %270 = vmatmul.mubr.f32.gmra.mrb[0].mxu0 %v50
    %v271 = vpop.f32.mrb[0].mxu0
    %v272 = vadd.f32 0.0, %v271
    %v273 = vpop.f32.mrb[0].mxu0
    %274 = vmatprep.mubr.f32.mxu0 0.0
    %275 = vmatmul.mubr.f32.gmra.mrb[0].mxu0 %v53
    %v276 = vpop.f32.mrb[0].mxu0
    %v277 = vadd.f32 0.0, %v276
    %v278 = vpop.f32.mrb[0].mxu0
    %279 = vdwg.mxu0
    %280 = vmatprep.subr.mxu0 0.0
    %281 = vmatpush1.msra.mxu0 %v34
    %282 = vmatprep.subr.mxu0 0.0
    %283 = vmatpush1.msra.mxu0 %v35
    %284 = vmatprep.subr.mxu0 0.0
    %285 = vmatpush1.msra.mxu0 0.0
    %286 = vmatprep.subr.mxu0 0.0
    %287 = vmatpush1.msra.mxu0 0.0
    %288 = vmatprep.subr.mxu0 0.0
    %289 = vmatpush1.msra.mxu0 0.0
    %290 = vmatprep.subr.mxu0 0.0
    %291 = vmatpush1.msra.mxu0 0.0
    %292 = vmatprep.subr.mxu0 0.0
    %293 = vmatpush1.msra.mxu0 0.0
    %294 = vmatprep.subr.mxu0 0.0
    %295 = vmatpush1.msra.mxu0 0.0
    %296 = vmatprep.subr.mxu0 0.0
    %297 = vmatpush1.msra.mxu0 0.0
    %298 = vmatprep.subr.mxu0 0.0
    %299 = vmatpush1.msra.mxu0 0.0
    %300 = vmatprep.subr.mxu0 0.0
    %301 = vmatpush1.msra.mxu0 0.0
    %302 = vmatprep.subr.mxu0 0.0
    %303 = vmatpush1.msra.mxu0 0.0
    %304 = vmatprep.subr.mxu0 0.0
    %305 = vmatpush1.msra.mxu0 0.0
    %306 = vmatprep.subr.mxu0 0.0
    %307 = vmatpush1.msra.mxu0 0.0
    %308 = vmatprep.subr.mxu0 0.0
    %309 = vmatpush1.msra.mxu0 0.0
    %310 = vmatprep.subr.mxu0 0.0
    %311 = vmatpush1.msra.mxu0 0.0
    %312 = vmatprep.subr.mxu0 0.0
    %313 = vmatpush1.msra.mxu0 0.0
    %314 = vmatprep.subr.mxu0 0.0
    %315 = vmatpush1.msra.mxu0 0.0
    %316 = vmatprep.subr.mxu0 0.0
    %317 = vmatpush1.msra.mxu0 0.0
    %318 = vmatprep.subr.mxu0 0.0
    %319 = vmatpush1.msra.mxu0 0.0
    %320 = vmatprep.subr.mxu0 0.0
    %321 = vmatpush1.msra.mxu0 0.0
    %322 = vmatprep.subr.mxu0 0.0
    %323 = vmatpush1.msra.mxu0 0.0
    %324 = vmatprep.subr.mxu0 0.0
    %325 = vmatpush1.msra.mxu0 0.0
    %326 = vmatprep.subr.mxu0 0.0
    %327 = vmatpush1.msra.mxu0 0.0
    %328 = vmatprep.subr.mxu0 0.0
    %329 = vmatpush1.msra.mxu0 0.0
    %330 = vmatprep.subr.mxu0 0.0
    %331 = vmatpush1.msra.mxu0 0.0
    %332 = vmatprep.subr.mxu0 0.0
    %333 = vmatpush1.msra.mxu0 0.0
    %334 = vmatprep.subr.mxu0 0.0
    %335 = vmatpush1.msra.mxu0 0.0
    %336 = vmatprep.subr.mxu0 0.0
    %337 = vmatpush1.msra.mxu0 0.0
    %338 = vmatprep.subr.mxu0 0.0
    %339 = vmatpush1.msra.mxu0 0.0
    %340 = vmatprep.subr.mxu0 0.0
    %341 = vmatpush1.msra.mxu0 0.0
    %342 = vmatprep.subr.mxu0 0.0
    %343 = vmatpush1.msra.mxu0 0.0
    %344 = vmatprep.mubr.f32.mxu0 0.0
    %345 = vmatmul.mubr.f32.gmra.mrb[0].mxu0 %v50
    %v346 = vpop.f32.mrb[0].mxu0
    %v347 = vadd.f32 0.0, %v346
    %v348 = vpop.f32.mrb[0].mxu0
    %349 = vmatprep.mubr.f32.mxu0 0.0
    %350 = vmatmul.mubr.f32.gmra.mrb[0].mxu0 %v53
    %v351 = vpop.f32.mrb[0].mxu0
    %v352 = vadd.f32 0.0, %v351
    %v353 = vpop.f32.mrb[0].mxu0
    %354 = vdwg.mxu0
    %355 = vmatprep.subr.mxu0 0.0
    %356 = vmatpush1.msra.mxu0 %v36
    %357 = vmatprep.subr.mxu0 0.0
    %358 = vmatpush1.msra.mxu0 %v37
    %359 = vmatprep.subr.mxu0 0.0
    %360 = vmatpush1.msra.mxu0 0.0
    %361 = vmatprep.subr.mxu0 0.0
    %362 = vmatpush1.msra.mxu0 0.0
    %363 = vmatprep.subr.mxu0 0.0
    %364 = vmatpush1.msra.mxu0 0.0
    %365 = vmatprep.subr.mxu0 0.0
    %366 = vmatpush1.msra.mxu0 0.0
    %367 = vmatprep.subr.mxu0 0.0
    %368 = vmatpush1.msra.mxu0 0.0
    %369 = vmatprep.subr.mxu0 0.0
    %370 = vmatpush1.msra.mxu0 0.0
    %371 = vmatprep.subr.mxu0 0.0
    %372 = vmatpush1.msra.mxu0 0.0
    %373 = vmatprep.subr.mxu0 0.0
    %374 = vmatpush1.msra.mxu0 0.0
    %375 = vmatprep.subr.mxu0 0.0
    %376 = vmatpush1.msra.mxu0 0.0
    %377 = vmatprep.subr.mxu0 0.0
    %378 = vmatpush1.msra.mxu0 0.0
    %379 = vmatprep.subr.mxu0 0.0
    %380 = vmatpush1.msra.mxu0 0.0
    %381 = vmatprep.subr.mxu0 0.0
    %382 = vmatpush1.msra.mxu0 0.0
    %383 = vmatprep.subr.mxu0 0.0
    %384 = vmatpush1.msra.mxu0 0.0
    %385 = vmatprep.subr.mxu0 0.0
    %386 = vmatpush1.msra.mxu0 0.0
    %387 = vmatprep.subr.mxu0 0.0
    %388 = vmatpush1.msra.mxu0 0.0
    %389 = vmatprep.subr.mxu0 0.0
    %390 = vmatpush1.msra.mxu0 0.0
    %391 = vmatprep.subr.mxu0 0.0
    %392 = vmatpush1.msra.mxu0 0.0
    %393 = vmatprep.subr.mxu0 0.0
    %394 = vmatpush1.msra.mxu0 0.0
    %395 = vmatprep.subr.mxu0 0.0
    %396 = vmatpush1.msra.mxu0 0.0
    %397 = vmatprep.subr.mxu0 0.0
    %398 = vmatpush1.msra.mxu0 0.0
    %399 = vmatprep.subr.mxu0 0.0
    %400 = vmatpush1.msra.mxu0 0.0
    %401 = vmatprep.subr.mxu0 0.0
    %402 = vmatpush1.msra.mxu0 0.0
    %403 = vmatprep.subr.mxu0 0.0
    %404 = vmatpush1.msra.mxu0 0.0
    %405 = vmatprep.subr.mxu0 0.0
    %406 = vmatpush1.msra.mxu0 0.0
    %407 = vmatprep.subr.mxu0 0.0
    %408 = vmatpush1.msra.mxu0 0.0
    %409 = vmatprep.subr.mxu0 0.0
    %410 = vmatpush1.msra.mxu0 0.0
    %411 = vmatprep.subr.mxu0 0.0
    %412 = vmatpush1.msra.mxu0 0.0
    %413 = vmatprep.subr.mxu0 0.0
    %414 = vmatpush1.msra.mxu0 0.0
    %415 = vmatprep.subr.mxu0 0.0
    %416 = vmatpush1.msra.mxu0 0.0
    %417 = vmatprep.subr.mxu0 0.0
    %418 = vmatpush1.msra.mxu0 0.0
    %419 = vmatprep.mubr.f32.mxu0 0.0
    %420 = vmatmul.mubr.f32.gmra.mrb[0].mxu0 %v50
    %v421 = vpop.f32.mrb[0].mxu0
    %v422 = vadd.f32 0.0, %v421
    %v423 = vpop.f32.mrb[0].mxu0
    %424 = vmatprep.mubr.f32.mxu0 0.0
    %425 = vmatmul.mubr.f32.gmra.mrb[0].mxu0 %v53
    %v426 = vpop.f32.mrb[0].mxu0
    %v427 = vadd.f32 0.0, %v426
    %v428 = vpop.f32.mrb[0].mxu0
    %429 = vdwg.mxu0
    %430 = vmatprep.subr.mxu0 0.0
    %431 = vmatpush1.msra.mxu0 %v38
    %432 = vmatprep.subr.mxu0 0.0
    %433 = vmatpush1.msra.mxu0 %v39
    %434 = vmatprep.subr.mxu0 0.0
    %435 = vmatpush1.msra.mxu0 0.0
    %436 = vmatprep.subr.mxu0 0.0
    %437 = vmatpush1.msra.mxu0 0.0
    %438 = vmatprep.subr.mxu0 0.0
    %439 = vmatpush1.msra.mxu0 0.0
    %440 = vmatprep.subr.mxu0 0.0
    %441 = vmatpush1.msra.mxu0 0.0
    %442 = vmatprep.subr.mxu0 0.0
    %443 = vmatpush1.msra.mxu0 0.0
    %444 = vmatprep.subr.mxu0 0.0
    %445 = vmatpush1.msra.mxu0 0.0
    %446 = vmatprep.subr.mxu0 0.0
    %447 = vmatpush1.msra.mxu0 0.0
    %448 = vmatprep.subr.mxu0 0.0
    %449 = vmatpush1.msra.mxu0 0.0
    %450 = vmatprep.subr.mxu0 0.0
    %451 = vmatpush1.msra.mxu0 0.0
    %452 = vmatprep.subr.mxu0 0.0
    %453 = vmatpush1.msra.mxu0 0.0
    %454 = vmatprep.subr.mxu0 0.0
    %455 = vmatpush1.msra.mxu0 0.0
    %456 = vmatprep.subr.mxu0 0.0
    %457 = vmatpush1.msra.mxu0 0.0
    %458 = vmatprep.subr.mxu0 0.0
    %459 = vmatpush1.msra.mxu0 0.0
    %460 = vmatprep.subr.mxu0 0.0
    %461 = vmatpush1.msra.mxu0 0.0
    %462 = vmatprep.subr.mxu0 0.0
    %463 = vmatpush1.msra.mxu0 0.0
    %464 = vmatprep.subr.mxu0 0.0
    %465 = vmatpush1.msra.mxu0 0.0
    %466 = vmatprep.subr.mxu0 0.0
    %467 = vmatpush1.msra.mxu0 0.0
    %468 = vmatprep.subr.mxu0 0.0
    %469 = vmatpush1.msra.mxu0 0.0
    %470 = vmatprep.subr.mxu0 0.0
    %471 = vmatpush1.msra.mxu0 0.0
    %472 = vmatprep.subr.mxu0 0.0
    %473 = vmatpush1.msra.mxu0 0.0
    %474 = vmatprep.subr.mxu0 0.0
    %475 = vmatpush1.msra.mxu0 0.0
    %476 = vmatprep.subr.mxu0 0.0
    %477 = vmatpush1.msra.mxu0 0.0
    %478 = vmatprep.subr.mxu0 0.0
    %479 = vmatpush1.msra.mxu0 0.0
    %480 = vmatprep.subr.mxu0 0.0
    %481 = vmatpush1.msra.mxu0 0.0
    %482 = vmatprep.subr.mxu0 0.0
    %483 = vmatpush1.msra.mxu0 0.0
    %484 = vmatprep.subr.mxu0 0.0
    %485 = vmatpush1.msra.mxu0 0.0
    %486 = vmatprep.subr.mxu0 0.0
    %487 = vmatpush1.msra.mxu0 0.0
    %488 = vmatprep.subr.mxu0 0.0
    %489 = vmatpush1.msra.mxu0 0.0
    %490 = vmatprep.subr.mxu0 0.0
    %491 = vmatpush1.msra.mxu0 0.0
    %492 = vmatprep.subr.mxu0 0.0
    %493 = vmatpush1.msra.mxu0 0.0
    %494 = vmatprep.mubr.f32.mxu0 0.0
    %495 = vmatmul.mubr.f32.gmra.mrb[0].mxu0 %v50
    %v496 = vpop.f32.mrb[0].mxu0
    %v497 = vadd.f32 0.0, %v496
    %v498 = vpop.f32.mrb[0].mxu0
    %499 = vmatprep.mubr.f32.mxu0 0.0
    %500 = vmatmul.mubr.f32.gmra.mrb[0].mxu0 %v53
    %v501 = vpop.f32.mrb[0].mxu0
    %v502 = vadd.f32 0.0, %v501
    %v503 = vpop.f32.mrb[0].mxu0
    %504 = vdwg.mxu0
    %505 = vmatprep.subr.mxu0 0.0
    %506 = vmatpush1.msra.mxu0 %v40
    %507 = vmatprep.subr.mxu0 0.0
    %508 = vmatpush1.msra.mxu0 %v41
    %509 = vmatprep.subr.mxu0 0.0
    %510 = vmatpush1.msra.mxu0 0.0
    %511 = vmatprep.subr.mxu0 0.0
    %512 = vmatpush1.msra.mxu0 0.0
    %513 = vmatprep.subr.mxu0 0.0
    %514 = vmatpush1.msra.mxu0 0.0
    %515 = vmatprep.subr.mxu0 0.0
    %516 = vmatpush1.msra.mxu0 0.0
    %517 = vmatprep.subr.mxu0 0.0
    %518 = vmatpush1.msra.mxu0 0.0
    %519 = vmatprep.subr.mxu0 0.0
    %520 = vmatpush1.msra.mxu0 0.0
    %521 = vmatprep.subr.mxu0 0.0
    %522 = vmatpush1.msra.mxu0 0.0
    %523 = vmatprep.subr.mxu0 0.0
    %524 = vmatpush1.msra.mxu0 0.0
    %525 = vmatprep.subr.mxu0 0.0
    %526 = vmatpush1.msra.mxu0 0.0
    %527 = vmatprep.subr.mxu0 0.0
    %528 = vmatpush1.msra.mxu0 0.0
    %529 = vmatprep.subr.mxu0 0.0
    %530 = vmatpush1.msra.mxu0 0.0
    %531 = vmatprep.subr.mxu0 0.0
    %532 = vmatpush1.msra.mxu0 0.0
    %533 = vmatprep.subr.mxu0 0.0
    %534 = vmatpush1.msra.mxu0 0.0
    %535 = vmatprep.subr.mxu0 0.0
    %536 = vmatpush1.msra.mxu0 0.0
    %537 = vmatprep.subr.mxu0 0.0
    %538 = vmatpush1.msra.mxu0 0.0
    %539 = vmatprep.subr.mxu0 0.0
    %540 = vmatpush1.msra.mxu0 0.0
    %541 = vmatprep.subr.mxu0 0.0
    %542 = vmatpush1.msra.mxu0 0.0
    %543 = vmatprep.subr.mxu0 0.0
    %544 = vmatpush1.msra.mxu0 0.0
    %545 = vmatprep.subr.mxu0 0.0
    %546 = vmatpush1.msra.mxu0 0.0
    %547 = vmatprep.subr.mxu0 0.0
    %548 = vmatpush1.msra.mxu0 0.0
    %549 = vmatprep.subr.mxu0 0.0
    %550 = vmatpush1.msra.mxu0 0.0
    %551 = vmatprep.subr.mxu0 0.0
    %552 = vmatpush1.msra.mxu0 0.0
    %553 = vmatprep.subr.mxu0 0.0
    %554 = vmatpush1.msra.mxu0 0.0
    %555 = vmatprep.subr.mxu0 0.0
    %556 = vmatpush1.msra.mxu0 0.0
    %557 = vmatprep.subr.mxu0 0.0
    %558 = vmatpush1.msra.mxu0 0.0
    %559 = vmatprep.subr.mxu0 0.0
    %560 = vmatpush1.msra.mxu0 0.0
    %561 = vmatprep.subr.mxu0 0.0
    %562 = vmatpush1.msra.mxu0 0.0
    %563 = vmatprep.subr.mxu0 0.0
    %564 = vmatpush1.msra.mxu0 0.0
    %565 = vmatprep.subr.mxu0 0.0
    %566 = vmatpush1.msra.mxu0 0.0
    %567 = vmatprep.subr.mxu0 0.0
    %568 = vmatpush1.msra.mxu0 0.0
    %569 = vmatprep.mubr.f32.mxu0 0.0
    %570 = vmatmul.mubr.f32.gmra.mrb[0].mxu0 %v50
    %v571 = vpop.f32.mrb[0].mxu0
    %v572 = vadd.f32 0.0, %v571
    %v573 = vpop.f32.mrb[0].mxu0
    %574 = vmatprep.mubr.f32.mxu0 0.0
    %575 = vmatmul.mubr.f32.gmra.mrb[0].mxu0 %v53
    %v576 = vpop.f32.mrb[0].mxu0
    %v577 = vadd.f32 0.0, %v576
    %v578 = vpop.f32.mrb[0].mxu0
    %579 = vdwg.mxu0
    %580 = vmatprep.subr.mxu0 0.0
    %581 = vmatpush1.msra.mxu0 %v42
    %582 = vmatprep.subr.mxu0 0.0
    %583 = vmatpush1.msra.mxu0 %v43
    %584 = vmatprep.subr.mxu0 0.0
    %585 = vmatpush1.msra.mxu0 0.0
    %586 = vmatprep.subr.mxu0 0.0
    %587 = vmatpush1.msra.mxu0 0.0
    %588 = vmatprep.subr.mxu0 0.0
    %589 = vmatpush1.msra.mxu0 0.0
    %590 = vmatprep.subr.mxu0 0.0
    %591 = vmatpush1.msra.mxu0 0.0
    %592 = vmatprep.subr.mxu0 0.0
    %593 = vmatpush1.msra.mxu0 0.0
    %594 = vmatprep.subr.mxu0 0.0
    %595 = vmatpush1.msra.mxu0 0.0
    %596 = vmatprep.subr.mxu0 0.0
    %597 = vmatpush1.msra.mxu0 0.0
    %598 = vmatprep.subr.mxu0 0.0
    %599 = vmatpush1.msra.mxu0 0.0
    %600 = vmatprep.subr.mxu0 0.0
    %601 = vmatpush1.msra.mxu0 0.0
    %602 = vmatprep.subr.mxu0 0.0
    %603 = vmatpush1.msra.mxu0 0.0
    %604 = vmatprep.subr.mxu0 0.0
    %605 = vmatpush1.msra.mxu0 0.0
    %606 = vmatprep.subr.mxu0 0.0
    %607 = vmatpush1.msra.mxu0 0.0
    %608 = vmatprep.subr.mxu0 0.0
    %609 = vmatpush1.msra.mxu0 0.0
    %610 = vmatprep.subr.mxu0 0.0
    %611 = vmatpush1.msra.mxu0 0.0
    %612 = vmatprep.subr.mxu0 0.0
    %613 = vmatpush1.msra.mxu0 0.0
    %614 = vmatprep.subr.mxu0 0.0
    %615 = vmatpush1.msra.mxu0 0.0
    %616 = vmatprep.subr.mxu0 0.0
    %617 = vmatpush1.msra.mxu0 0.0
    %618 = vmatprep.subr.mxu0 0.0
    %619 = vmatpush1.msra.mxu0 0.0
    %620 = vmatprep.subr.mxu0 0.0
    %621 = vmatpush1.msra.mxu0 0.0
    %622 = vmatprep.subr.mxu0 0.0
    %623 = vmatpush1.msra.mxu0 0.0
    %624 = vmatprep.subr.mxu0 0.0
    %625 = vmatpush1.msra.mxu0 0.0
    %626 = vmatprep.subr.mxu0 0.0
    %627 = vmatpush1.msra.mxu0 0.0
    %628 = vmatprep.subr.mxu0 0.0
    %629 = vmatpush1.msra.mxu0 0.0
    %630 = vmatprep.subr.mxu0 0.0
    %631 = vmatpush1.msra.mxu0 0.0
    %632 = vmatprep.subr.mxu0 0.0
    %633 = vmatpush1.msra.mxu0 0.0
    %634 = vmatprep.subr.mxu0 0.0
    %635 = vmatpush1.msra.mxu0 0.0
    %636 = vmatprep.subr.mxu0 0.0
    %637 = vmatpush1.msra.mxu0 0.0
    %638 = vmatprep.subr.mxu0 0.0
    %639 = vmatpush1.msra.mxu0 0.0
    %640 = vmatprep.subr.mxu0 0.0
    %641 = vmatpush1.msra.mxu0 0.0
    %642 = vmatprep.subr.mxu0 0.0
    %643 = vmatpush1.msra.mxu0 0.0
    %644 = vmatprep.mubr.f32.mxu0 0.0
    %645 = vmatmul.mubr.f32.gmra.mrb[0].mxu0 %v50
    %v646 = vpop.f32.mrb[0].mxu0
    %v647 = vadd.f32 0.0, %v646
    %v648 = vpop.f32.mrb[0].mxu0
    %649 = vmatprep.mubr.f32.mxu0 0.0
    %650 = vmatmul.mubr.f32.gmra.mrb[0].mxu0 %v53
    %v651 = vpop.f32.mrb[0].mxu0
    %v652 = vadd.f32 0.0, %v651
    %v653 = vpop.f32.mrb[0].mxu0
    %654 = vdwg.mxu0
    %v656 = vsel %vm48, %v122, 0
    %v659 = vsel %vm48, %v127, 0
    %661 = vmatprep.subr.mxu0 0.0
    %662 = vmatpush1.msra.mxu0 %v46
    %663 = vmatprep.subr.mxu0 0.0
    %664 = vmatpush1.msra.mxu0 %v47
    %665 = vmatprep.subr.mxu0 0.0
    %666 = vmatpush1.msra.mxu0 0.0
    %667 = vmatprep.subr.mxu0 0.0
    %668 = vmatpush1.msra.mxu0 0.0
    %669 = vmatprep.subr.mxu0 0.0
    %670 = vmatpush1.msra.mxu0 0.0
    %671 = vmatprep.subr.mxu0 0.0
    %672 = vmatpush1.msra.mxu0 0.0
    %673 = vmatprep.subr.mxu0 0.0
    %674 = vmatpush1.msra.mxu0 0.0
    %675 = vmatprep.subr.mxu0 0.0
    %676 = vmatpush1.msra.mxu0 0.0
    %677 = vmatprep.subr.mxu0 0.0
    %678 = vmatpush1.msra.mxu0 0.0
    %679 = vmatprep.subr.mxu0 0.0
    %680 = vmatpush1.msra.mxu0 0.0
    %681 = vmatprep.subr.mxu0 0.0
    %682 = vmatpush1.msra.mxu0 0.0
    %683 = vmatprep.subr.mxu0 0.0
    %684 = vmatpush1.msra.mxu0 0.0
    %685 = vmatprep.subr.mxu0 0.0
    %686 = vmatpush1.msra.mxu0 0.0
    %687 = vmatprep.subr.mxu0 0.0
    %688 = vmatpush1.msra.mxu0 0.0
    %689 = vmatprep.subr.mxu0 0.0
    %690 = vmatpush1.msra.mxu0 0.0
    %691 = vmatprep.subr.mxu0 0.0
    %692 = vmatpush1.msra.mxu0 0.0
    %693 = vmatprep.subr.mxu0 0.0
    %694 = vmatpush1.msra.mxu0 0.0
    %695 = vmatprep.subr.mxu0 0.0
    %696 = vmatpush1.msra.mxu0 0.0
    %697 = vmatprep.subr.mxu0 0.0
    %698 = vmatpush1.msra.mxu0 0.0
    %699 = vmatprep.subr.mxu0 0.0
    %700 = vmatpush1.msra.mxu0 0.0
    %701 = vmatprep.subr.mxu0 0.0
    %702 = vmatpush1.msra.mxu0 0.0
    %703 = vmatprep.subr.mxu0 0.0
    %704 = vmatpush1.msra.mxu0 0.0
    %705 = vmatprep.subr.mxu0 0.0
    %706 = vmatpush1.msra.mxu0 0.0
    %707 = vmatprep.subr.mxu0 0.0
    %708 = vmatpush1.msra.mxu0 0.0
    %709 = vmatprep.subr.mxu0 0.0
    %710 = vmatpush1.msra.mxu0 0.0
    %711 = vmatprep.subr.mxu0 0.0
    %712 = vmatpush1.msra.mxu0 0.0
    %713 = vmatprep.subr.mxu0 0.0
    %714 = vmatpush1.msra.mxu0 0.0
    %715 = vmatprep.subr.mxu0 0.0
    %716 = vmatpush1.msra.mxu0 0.0
    %717 = vmatprep.subr.mxu0 0.0
    %718 = vmatpush1.msra.mxu0 0.0
    %719 = vmatprep.subr.mxu0 0.0
    %720 = vmatpush1.msra.mxu0 0.0
    %721 = vmatprep.subr.mxu0 0.0
    %722 = vmatpush1.msra.mxu0 0.0
    %723 = vmatprep.subr.mxu0 0.0
    %724 = vmatpush1.msra.mxu0 0.0
    %725 = vmatprep.mubr.f32.mxu0 0.0
    %726 = vmatmul.mubr.f32.gmra.mrb[0].mxu0 %v656
    %v727 = vpop.f32.mrb[0].mxu0
    %v728 = vadd.f32 0.0, %v727
    %v729 = vpop.f32.mrb[0].mxu0
    %730 = vmatprep.mubr.f32.mxu0 0.0
    %731 = vmatmul.mubr.f32.gmra.mrb[0].mxu0 %v659
    %v732 = vpop.f32.mrb[0].mxu0
    %v733 = vadd.f32 0.0, %v732
    %v734 = vpop.f32.mrb[0].mxu0
    %735 = vdwg.mxu0
    %v737 = vsel %vm48, %v197, 0
    %v740 = vsel %vm48, %v202, 0
    %742 = vmatprep.subr.mxu0 0.0
    %743 = vmatpush1.msra.mxu0 %v46
    %744 = vmatprep.subr.mxu0 0.0
    %745 = vmatpush1.msra.mxu0 %v47
    %746 = vmatprep.subr.mxu0 0.0
    %747 = vmatpush1.msra.mxu0 0.0
    %748 = vmatprep.subr.mxu0 0.0
    %749 = vmatpush1.msra.mxu0 0.0
    %750 = vmatprep.subr.mxu0 0.0
    %751 = vmatpush1.msra.mxu0 0.0
    %752 = vmatprep.subr.mxu0 0.0
    %753 = vmatpush1.msra.mxu0 0.0
    %754 = vmatprep.subr.mxu0 0.0
    %755 = vmatpush1.msra.mxu0 0.0
    %756 = vmatprep.subr.mxu0 0.0
    %757 = vmatpush1.msra.mxu0 0.0
    %758 = vmatprep.subr.mxu0 0.0
    %759 = vmatpush1.msra.mxu0 0.0
    %760 = vmatprep.subr.mxu0 0.0
    %761 = vmatpush1.msra.mxu0 0.0
    %762 = vmatprep.subr.mxu0 0.0
    %763 = vmatpush1.msra.mxu0 0.0
    %764 = vmatprep.subr.mxu0 0.0
    %765 = vmatpush1.msra.mxu0 0.0
    %766 = vmatprep.subr.mxu0 0.0
    %767 = vmatpush1.msra.mxu0 0.0
    %768 = vmatprep.subr.mxu0 0.0
    %769 = vmatpush1.msra.mxu0 0.0
    %770 = vmatprep.subr.mxu0 0.0
    %771 = vmatpush1.msra.mxu0 0.0
    %772 = vmatprep.subr.mxu0 0.0
    %773 = vmatpush1.msra.mxu0 0.0
    %774 = vmatprep.subr.mxu0 0.0
    %775 = vmatpush1.msra.mxu0 0.0
    %776 = vmatprep.subr.mxu0 0.0
    %777 = vmatpush1.msra.mxu0 0.0
    %778 = vmatprep.subr.mxu0 0.0
    %779 = vmatpush1.msra.mxu0 0.0
    %780 = vmatprep.subr.mxu0 0.0
    %781 = vmatpush1.msra.mxu0 0.0
    %782 = vmatprep.subr.mxu0 0.0
    %783 = vmatpush1.msra.mxu0 0.0
    %784 = vmatprep.subr.mxu0 0.0
    %785 = vmatpush1.msra.mxu0 0.0
    %786 = vmatprep.subr.mxu0 0.0
    %787 = vmatpush1.msra.mxu0 0.0
    %788 = vmatprep.subr.mxu0 0.0
    %789 = vmatpush1.msra.mxu0 0.0
    %790 = vmatprep.subr.mxu0 0.0
    %791 = vmatpush1.msra.mxu0 0.0
    %792 = vmatprep.subr.mxu0 0.0
    %793 = vmatpush1.msra.mxu0 0.0
    %794 = vmatprep.subr.mxu0 0.0
    %795 = vmatpush1.msra.mxu0 0.0
    %796 = vmatprep.subr.mxu0 0.0
    %797 = vmatpush1.msra.mxu0 0.0
    %798 = vmatprep.subr.mxu0 0.0
    %799 = vmatpush1.msra.mxu0 0.0
    %800 = vmatprep.subr.mxu0 0.0
    %801 = vmatpush1.msra.mxu0 0.0
    %802 = vmatprep.subr.mxu0 0.0
    %803 = vmatpush1.msra.mxu0 0.0
    %804 = vmatprep.subr.mxu0 0.0
    %805 = vmatpush1.msra.mxu0 0.0
    %806 = vmatprep.mubr.f32.mxu0 0.0
    %807 = vmatmul.mubr.f32.gmra.mrb[0].mxu0 %v737
    %v808 = vpop.f32.mrb[0].mxu0
    %v809 = vadd.f32 0.0, %v808
    %v810 = vpop.f32.mrb[0].mxu0
    %811 = vmatprep.mubr.f32.mxu0 0.0
    %812 = vmatmul.mubr.f32.gmra.mrb[0].mxu0 %v740
    %v813 = vpop.f32.mrb[0].mxu0
    %v814 = vadd.f32 0.0, %v813
    %v815 = vpop.f32.mrb[0].mxu0
    %816 = vdwg.mxu0
    %v818 = vsel %vm48, %v272, 0
    %v821 = vsel %vm48, %v277, 0
    %823 = vmatprep.subr.mxu0 0.0
    %824 = vmatpush1.msra.mxu0 %v46
    %825 = vmatprep.subr.mxu0 0.0
    %826 = vmatpush1.msra.mxu0 %v47
    %827 = vmatprep.subr.mxu0 0.0
    %828 = vmatpush1.msra.mxu0 0.0
    %829 = vmatprep.subr.mxu0 0.0
    %830 = vmatpush1.msra.mxu0 0.0
    %831 = vmatprep.subr.mxu0 0.0
    %832 = vmatpush1.msra.mxu0 0.0
    %833 = vmatprep.subr.mxu0 0.0
    %834 = vmatpush1.msra.mxu0 0.0
    %835 = vmatprep.subr.mxu0 0.0
    %836 = vmatpush1.msra.mxu0 0.0
    %837 = vmatprep.subr.mxu0 0.0
    %838 = vmatpush1.msra.mxu0 0.0
    %839 = vmatprep.subr.mxu0 0.0
    %840 = vmatpush1.msra.mxu0 0.0
    %841 = vmatprep.subr.mxu0 0.0
    %842 = vmatpush1.msra.mxu0 0.0
    %843 = vmatprep.subr.mxu0 0.0
    %844 = vmatpush1.msra.mxu0 0.0
    %845 = vmatprep.subr.mxu0 0.0
    %846 = vmatpush1.msra.mxu0 0.0
    %847 = vmatprep.subr.mxu0 0.0
    %848 = vmatpush1.msra.mxu0 0.0
    %849 = vmatprep.subr.mxu0 0.0
    %850 = vmatpush1.msra.mxu0 0.0
    %851 = vmatprep.subr.mxu0 0.0
    %852 = vmatpush1.msra.mxu0 0.0
    %853 = vmatprep.subr.mxu0 0.0
    %854 = vmatpush1.msra.mxu0 0.0
    %855 = vmatprep.subr.mxu0 0.0
    %856 = vmatpush1.msra.mxu0 0.0
    %857 = vmatprep.subr.mxu0 0.0
    %858 = vmatpush1.msra.mxu0 0.0
    %859 = vmatprep.subr.mxu0 0.0
    %860 = vmatpush1.msra.mxu0 0.0
    %861 = vmatprep.subr.mxu0 0.0
    %862 = vmatpush1.msra.mxu0 0.0
    %863 = vmatprep.subr.mxu0 0.0
    %864 = vmatpush1.msra.mxu0 0.0
    %865 = vmatprep.subr.mxu0 0.0
    %866 = vmatpush1.msra.mxu0 0.0
    %867 = vmatprep.subr.mxu0 0.0
    %868 = vmatpush1.msra.mxu0 0.0
    %869 = vmatprep.subr.mxu0 0.0
    %870 = vmatpush1.msra.mxu0 0.0
    %871 = vmatprep.subr.mxu0 0.0
    %872 = vmatpush1.msra.mxu0 0.0
    %873 = vmatprep.subr.mxu0 0.0
    %874 = vmatpush1.msra.mxu0 0.0
    %875 = vmatprep.subr.mxu0 0.0
    %876 = vmatpush1.msra.mxu0 0.0
    %877 = vmatprep.subr.mxu0 0.0
    %878 = vmatpush1.msra.mxu0 0.0
    %879 = vmatprep.subr.mxu0 0.0
    %880 = vmatpush1.msra.mxu0 0.0
    %881 = vmatprep.subr.mxu0 0.0
    %882 = vmatpush1.msra.mxu0 0.0
    %883 = vmatprep.subr.mxu0 0.0
    %884 = vmatpush1.msra.mxu0 0.0
    %885 = vmatprep.subr.mxu0 0.0
    %886 = vmatpush1.msra.mxu0 0.0
    %887 = vmatprep.mubr.f32.mxu0 0.0
    %888 = vmatmul.mubr.f32.gmra.mrb[0].mxu0 %v818
    %v889 = vpop.f32.mrb[0].mxu0
    %v890 = vadd.f32 0.0, %v889
    %v891 = vpop.f32.mrb[0].mxu0
    %892 = vmatprep.mubr.f32.mxu0 0.0
    %893 = vmatmul.mubr.f32.gmra.mrb[0].mxu0 %v821
    %v894 = vpop.f32.mrb[0].mxu0
    %v895 = vadd.f32 0.0, %v894
    %v896 = vpop.f32.mrb[0].mxu0
    %897 = vdwg.mxu0
    %v899 = vsel %vm48, %v347, 0
    %v902 = vsel %vm48, %v352, 0
    %904 = vmatprep.subr.mxu0 0.0
    %905 = vmatpush1.msra.mxu0 %v46
    %906 = vmatprep.subr.mxu0 0.0
    %907 = vmatpush1.msra.mxu0 %v47
    %908 = vmatprep.subr.mxu0 0.0
    %909 = vmatpush1.msra.mxu0 0.0
    %910 = vmatprep.subr.mxu0 0.0
    %911 = vmatpush1.msra.mxu0 0.0
    %912 = vmatprep.subr.mxu0 0.0
    %913 = vmatpush1.msra.mxu0 0.0
    %914 = vmatprep.subr.mxu0 0.0
    %915 = vmatpush1.msra.mxu0 0.0
    %916 = vmatprep.subr.mxu0 0.0
    %917 = vmatpush1.msra.mxu0 0.0
    %918 = vmatprep.subr.mxu0 0.0
    %919 = vmatpush1.msra.mxu0 0.0
    %920 = vmatprep.subr.mxu0 0.0
    %921 = vmatpush1.msra.mxu0 0.0
    %922 = vmatprep.subr.mxu0 0.0
    %923 = vmatpush1.msra.mxu0 0.0
    %924 = vmatprep.subr.mxu0 0.0
    %925 = vmatpush1.msra.mxu0 0.0
    %926 = vmatprep.subr.mxu0 0.0
    %927 = vmatpush1.msra.mxu0 0.0
    %928 = vmatprep.subr.mxu0 0.0
    %929 = vmatpush1.msra.mxu0 0.0
    %930 = vmatprep.subr.mxu0 0.0
    %931 = vmatpush1.msra.mxu0 0.0
    %932 = vmatprep.subr.mxu0 0.0
    %933 = vmatpush1.msra.mxu0 0.0
    %934 = vmatprep.subr.mxu0 0.0
    %935 = vmatpush1.msra.mxu0 0.0
    %936 = vmatprep.subr.mxu0 0.0
    %937 = vmatpush1.msra.mxu0 0.0
    %938 = vmatprep.subr.mxu0 0.0
    %939 = vmatpush1.msra.mxu0 0.0
    %940 = vmatprep.subr.mxu0 0.0
    %941 = vmatpush1.msra.mxu0 0.0
    %942 = vmatprep.subr.mxu0 0.0
    %943 = vmatpush1.msra.mxu0 0.0
    %944 = vmatprep.subr.mxu0 0.0
    %945 = vmatpush1.msra.mxu0 0.0
    %946 = vmatprep.subr.mxu0 0.0
    %947 = vmatpush1.msra.mxu0 0.0
    %948 = vmatprep.subr.mxu0 0.0
    %949 = vmatpush1.msra.mxu0 0.0
    %950 = vmatprep.subr.mxu0 0.0
    %951 = vmatpush1.msra.mxu0 0.0
    %952 = vmatprep.subr.mxu0 0.0
    %953 = vmatpush1.msra.mxu0 0.0
    %954 = vmatprep.subr.mxu0 0.0
    %955 = vmatpush1.msra.mxu0 0.0
    %956 = vmatprep.subr.mxu0 0.0
    %957 = vmatpush1.msra.mxu0 0.0
    %958 = vmatprep.subr.mxu0 0.0
    %959 = vmatpush1.msra.mxu0 0.0
    %960 = vmatprep.subr.mxu0 0.0
    %961 = vmatpush1.msra.mxu0 0.0
    %962 = vmatprep.subr.mxu0 0.0
    %963 = vmatpush1.msra.mxu0 0.0
    %964 = vmatprep.subr.mxu0 0.0
    %965 = vmatpush1.msra.mxu0 0.0
    %966 = vmatprep.subr.mxu0 0.0
    %967 = vmatpush1.msra.mxu0 0.0
    %968 = vmatprep.mubr.f32.mxu0 0.0
    %969 = vmatmul.mubr.f32.gmra.mrb[0].mxu0 %v899
    %v970 = vpop.f32.mrb[0].mxu0
    %v971 = vadd.f32 0.0, %v970
    %v972 = vpop.f32.mrb[0].mxu0
    %973 = vmatprep.mubr.f32.mxu0 0.0
    %974 = vmatmul.mubr.f32.gmra.mrb[0].mxu0 %v902
    %v975 = vpop.f32.mrb[0].mxu0
    %v976 = vadd.f32 0.0, %v975
    %v977 = vpop.f32.mrb[0].mxu0
    %978 = vdwg.mxu0
    %v980 = vsel %vm48, %v422, 0
    %v983 = vsel %vm48, %v427, 0
    %985 = vmatprep.subr.mxu0 0.0
    %986 = vmatpush1.msra.mxu0 %v46
    %987 = vmatprep.subr.mxu0 0.0
    %988 = vmatpush1.msra.mxu0 %v47
    %989 = vmatprep.subr.mxu0 0.0
    %990 = vmatpush1.msra.mxu0 0.0
    %991 = vmatprep.subr.mxu0 0.0
    %992 = vmatpush1.msra.mxu0 0.0
    %993 = vmatprep.subr.mxu0 0.0
    %994 = vmatpush1.msra.mxu0 0.0
    %995 = vmatprep.subr.mxu0 0.0
    %996 = vmatpush1.msra.mxu0 0.0
    %997 = vmatprep.subr.mxu0 0.0
    %998 = vmatpush1.msra.mxu0 0.0
    %999 = vmatprep.subr.mxu0 0.0
    %1000 = vmatpush1.msra.mxu0 0.0
    %1001 = vmatprep.subr.mxu0 0.0
    %1002 = vmatpush1.msra.mxu0 0.0
    %1003 = vmatprep.subr.mxu0 0.0
    %1004 = vmatpush1.msra.mxu0 0.0
    %1005 = vmatprep.subr.mxu0 0.0
    %1006 = vmatpush1.msra.mxu0 0.0
    %1007 = vmatprep.subr.mxu0 0.0
    %1008 = vmatpush1.msra.mxu0 0.0
    %1009 = vmatprep.subr.mxu0 0.0
    %1010 = vmatpush1.msra.mxu0 0.0
    %1011 = vmatprep.subr.mxu0 0.0
    %1012 = vmatpush1.msra.mxu0 0.0
    %1013 = vmatprep.subr.mxu0 0.0
    %1014 = vmatpush1.msra.mxu0 0.0
    %1015 = vmatprep.subr.mxu0 0.0
    %1016 = vmatpush1.msra.mxu0 0.0
    %1017 = vmatprep.subr.mxu0 0.0
    %1018 = vmatpush1.msra.mxu0 0.0
    %1019 = vmatprep.subr.mxu0 0.0
    %1020 = vmatpush1.msra.mxu0 0.0
    %1021 = vmatprep.subr.mxu0 0.0
    %1022 = vmatpush1.msra.mxu0 0.0
    %1023 = vmatprep.subr.mxu0 0.0
    %1024 = vmatpush1.msra.mxu0 0.0
    %1025 = vmatprep.subr.mxu0 0.0
    %1026 = vmatpush1.msra.mxu0 0.0
    %1027 = vmatprep.subr.mxu0 0.0
    %1028 = vmatpush1.msra.mxu0 0.0
    %1029 = vmatprep.subr.mxu0 0.0
    %1030 = vmatpush1.msra.mxu0 0.0
    %1031 = vmatprep.subr.mxu0 0.0
    %1032 = vmatpush1.msra.mxu0 0.0
    %1033 = vmatprep.subr.mxu0 0.0
    %1034 = vmatpush1.msra.mxu0 0.0
    %1035 = vmatprep.subr.mxu0 0.0
    %1036 = vmatpush1.msra.mxu0 0.0
    %1037 = vmatprep.subr.mxu0 0.0
    %1038 = vmatpush1.msra.mxu0 0.0
    %1039 = vmatprep.subr.mxu0 0.0
    %1040 = vmatpush1.msra.mxu0 0.0
    %1041 = vmatprep.subr.mxu0 0.0
    %1042 = vmatpush1.msra.mxu0 0.0
    %1043 = vmatprep.subr.mxu0 0.0
    %1044 = vmatpush1.msra.mxu0 0.0
    %1045 = vmatprep.subr.mxu0 0.0
    %1046 = vmatpush1.msra.mxu0 0.0
    %1047 = vmatprep.subr.mxu0 0.0
    %1048 = vmatpush1.msra.mxu0 0.0
    %1049 = vmatprep.mubr.f32.mxu0 0.0
    %1050 = vmatmul.mubr.f32.gmra.mrb[0].mxu0 %v980
    %v1051 = vpop.f32.mrb[0].mxu0
    %v1052 = vadd.f32 0.0, %v1051
    %v1053 = vpop.f32.mrb[0].mxu0
    %1054 = vmatprep.mubr.f32.mxu0 0.0
    %1055 = vmatmul.mubr.f32.gmra.mrb[0].mxu0 %v983
    %v1056 = vpop.f32.mrb[0].mxu0
    %v1057 = vadd.f32 0.0, %v1056
    %v1058 = vpop.f32.mrb[0].mxu0
    %1059 = vdwg.mxu0
    %v1061 = vsel %vm48, %v497, 0
    %v1064 = vsel %vm48, %v502, 0
    %1066 = vmatprep.subr.mxu0 0.0
    %1067 = vmatpush1.msra.mxu0 %v46
    %1068 = vmatprep.subr.mxu0 0.0
    %1069 = vmatpush1.msra.mxu0 %v47
    %1070 = vmatprep.subr.mxu0 0.0
    %1071 = vmatpush1.msra.mxu0 0.0
    %1072 = vmatprep.subr.mxu0 0.0
    %1073 = vmatpush1.msra.mxu0 0.0
    %1074 = vmatprep.subr.mxu0 0.0
    %1075 = vmatpush1.msra.mxu0 0.0
    %1076 = vmatprep.subr.mxu0 0.0
    %1077 = vmatpush1.msra.mxu0 0.0
    %1078 = vmatprep.subr.mxu0 0.0
    %1079 = vmatpush1.msra.mxu0 0.0
    %1080 = vmatprep.subr.mxu0 0.0
    %1081 = vmatpush1.msra.mxu0 0.0
    %1082 = vmatprep.subr.mxu0 0.0
    %1083 = vmatpush1.msra.mxu0 0.0
    %1084 = vmatprep.subr.mxu0 0.0
    %1085 = vmatpush1.msra.mxu0 0.0
    %1086 = vmatprep.subr.mxu0 0.0
    %1087 = vmatpush1.msra.mxu0 0.0
    %1088 = vmatprep.subr.mxu0 0.0
    %1089 = vmatpush1.msra.mxu0 0.0
    %1090 = vmatprep.subr.mxu0 0.0
    %1091 = vmatpush1.msra.mxu0 0.0
    %1092 = vmatprep.subr.mxu0 0.0
    %1093 = vmatpush1.msra.mxu0 0.0
    %1094 = vmatprep.subr.mxu0 0.0
    %1095 = vmatpush1.msra.mxu0 0.0
    %1096 = vmatprep.subr.mxu0 0.0
    %1097 = vmatpush1.msra.mxu0 0.0
    %1098 = vmatprep.subr.mxu0 0.0
    %1099 = vmatpush1.msra.mxu0 0.0
    %1100 = vmatprep.subr.mxu0 0.0
    %1101 = vmatpush1.msra.mxu0 0.0
    %1102 = vmatprep.subr.mxu0 0.0
    %1103 = vmatpush1.msra.mxu0 0.0
    %1104 = vmatprep.subr.mxu0 0.0
    %1105 = vmatpush1.msra.mxu0 0.0
    %1106 = vmatprep.subr.mxu0 0.0
    %1107 = vmatpush1.msra.mxu0 0.0
    %1108 = vmatprep.subr.mxu0 0.0
    %1109 = vmatpush1.msra.mxu0 0.0
    %1110 = vmatprep.subr.mxu0 0.0
    %1111 = vmatpush1.msra.mxu0 0.0
    %1112 = vmatprep.subr.mxu0 0.0
    %1113 = vmatpush1.msra.mxu0 0.0
    %1114 = vmatprep.subr.mxu0 0.0
    %1115 = vmatpush1.msra.mxu0 0.0
    %1116 = vmatprep.subr.mxu0 0.0
    %1117 = vmatpush1.msra.mxu0 0.0
    %1118 = vmatprep.subr.mxu0 0.0
    %1119 = vmatpush1.msra.mxu0 0.0
    %1120 = vmatprep.subr.mxu0 0.0
    %1121 = vmatpush1.msra.mxu0 0.0
    %1122 = vmatprep.subr.mxu0 0.0
    %1123 = vmatpush1.msra.mxu0 0.0
    %1124 = vmatprep.subr.mxu0 0.0
    %1125 = vmatpush1.msra.mxu0 0.0
    %1126 = vmatprep.subr.mxu0 0.0
    %1127 = vmatpush1.msra.mxu0 0.0
    %1128 = vmatprep.subr.mxu0 0.0
    %1129 = vmatpush1.msra.mxu0 0.0
    %1130 = vmatprep.mubr.f32.mxu0 0.0
    %1131 = vmatmul.mubr.f32.gmra.mrb[0].mxu0 %v1061
    %v1132 = vpop.f32.mrb[0].mxu0
    %v1133 = vadd.f32 0.0, %v1132
    %v1134 = vpop.f32.mrb[0].mxu0
    %1135 = vmatprep.mubr.f32.mxu0 0.0
    %1136 = vmatmul.mubr.f32.gmra.mrb[0].mxu0 %v1064
    %v1137 = vpop.f32.mrb[0].mxu0
    %v1138 = vadd.f32 0.0, %v1137
    %v1139 = vpop.f32.mrb[0].mxu0
    %1140 = vdwg.mxu0
    %v1142 = vsel %vm48, %v572, 0
    %v1145 = vsel %vm48, %v577, 0
    %1147 = vmatprep.subr.mxu0 0.0
    %1148 = vmatpush1.msra.mxu0 %v46
    %1149 = vmatprep.subr.mxu0 0.0
    %1150 = vmatpush1.msra.mxu0 %v47
    %1151 = vmatprep.subr.mxu0 0.0
    %1152 = vmatpush1.msra.mxu0 0.0
    %1153 = vmatprep.subr.mxu0 0.0
    %1154 = vmatpush1.msra.mxu0 0.0
    %1155 = vmatprep.subr.mxu0 0.0
    %1156 = vmatpush1.msra.mxu0 0.0
    %1157 = vmatprep.subr.mxu0 0.0
    %1158 = vmatpush1.msra.mxu0 0.0
    %1159 = vmatprep.subr.mxu0 0.0
    %1160 = vmatpush1.msra.mxu0 0.0
    %1161 = vmatprep.subr.mxu0 0.0
    %1162 = vmatpush1.msra.mxu0 0.0
    %1163 = vmatprep.subr.mxu0 0.0
    %1164 = vmatpush1.msra.mxu0 0.0
    %1165 = vmatprep.subr.mxu0 0.0
    %1166 = vmatpush1.msra.mxu0 0.0
    %1167 = vmatprep.subr.mxu0 0.0
    %1168 = vmatpush1.msra.mxu0 0.0
    %1169 = vmatprep.subr.mxu0 0.0
    %1170 = vmatpush1.msra.mxu0 0.0
    %1171 = vmatprep.subr.mxu0 0.0
    %1172 = vmatpush1.msra.mxu0 0.0
    %1173 = vmatprep.subr.mxu0 0.0
    %1174 = vmatpush1.msra.mxu0 0.0
    %1175 = vmatprep.subr.mxu0 0.0
    %1176 = vmatpush1.msra.mxu0 0.0
    %1177 = vmatprep.subr.mxu0 0.0
    %1178 = vmatpush1.msra.mxu0 0.0
    %1179 = vmatprep.subr.mxu0 0.0
    %1180 = vmatpush1.msra.mxu0 0.0
    %1181 = vmatprep.subr.mxu0 0.0
    %1182 = vmatpush1.msra.mxu0 0.0
    %1183 = vmatprep.subr.mxu0 0.0
    %1184 = vmatpush1.msra.mxu0 0.0
    %1185 = vmatprep.subr.mxu0 0.0
    %1186 = vmatpush1.msra.mxu0 0.0
    %1187 = vmatprep.subr.mxu0 0.0
    %1188 = vmatpush1.msra.mxu0 0.0
    %1189 = vmatprep.subr.mxu0 0.0
    %1190 = vmatpush1.msra.mxu0 0.0
    %1191 = vmatprep.subr.mxu0 0.0
    %1192 = vmatpush1.msra.mxu0 0.0
    %1193 = vmatprep.subr.mxu0 0.0
    %1194 = vmatpush1.msra.mxu0 0.0
    %1195 = vmatprep.subr.mxu0 0.0
    %1196 = vmatpush1.msra.mxu0 0.0
    %1197 = vmatprep.subr.mxu0 0.0
    %1198 = vmatpush1.msra.mxu0 0.0
    %1199 = vmatprep.subr.mxu0 0.0
    %1200 = vmatpush1.msra.mxu0 0.0
    %1201 = vmatprep.subr.mxu0 0.0
    %1202 = vmatpush1.msra.mxu0 0.0
    %1203 = vmatprep.subr.mxu0 0.0
    %1204 = vmatpush1.msra.mxu0 0.0
    %1205 = vmatprep.subr.mxu0 0.0
    %1206 = vmatpush1.msra.mxu0 0.0
    %1207 = vmatprep.subr.mxu0 0.0
    %1208 = vmatpush1.msra.mxu0 0.0
    %1209 = vmatprep.subr.mxu0 0.0
    %1210 = vmatpush1.msra.mxu0 0.0
    %1211 = vmatprep.mubr.f32.mxu0 0.0
    %1212 = vmatmul.mubr.f32.gmra.mrb[0].mxu0 %v1142
    %v1213 = vpop.f32.mrb[0].mxu0
    %v1214 = vadd.f32 0.0, %v1213
    %v1215 = vpop.f32.mrb[0].mxu0
    %1216 = vmatprep.mubr.f32.mxu0 0.0
    %1217 = vmatmul.mubr.f32.gmra.mrb[0].mxu0 %v1145
    %v1218 = vpop.f32.mrb[0].mxu0
    %v1219 = vadd.f32 0.0, %v1218
    %v1220 = vpop.f32.mrb[0].mxu0
    %1221 = vdwg.mxu0
    %v1223 = vsel %vm48, %v647, 0
    %v1226 = vsel %vm48, %v652, 0
    %1228 = vmatprep.subr.mxu0 0.0
    %1229 = vmatpush1.msra.mxu0 %v46
    %1230 = vmatprep.subr.mxu0 0.0
    %1231 = vmatpush1.msra.mxu0 %v47
    %1232 = vmatprep.subr.mxu0 0.0
    %1233 = vmatpush1.msra.mxu0 0.0
    %1234 = vmatprep.subr.mxu0 0.0
    %1235 = vmatpush1.msra.mxu0 0.0
    %1236 = vmatprep.subr.mxu0 0.0
    %1237 = vmatpush1.msra.mxu0 0.0
    %1238 = vmatprep.subr.mxu0 0.0
    %1239 = vmatpush1.msra.mxu0 0.0
    %1240 = vmatprep.subr.mxu0 0.0
    %1241 = vmatpush1.msra.mxu0 0.0
    %1242 = vmatprep.subr.mxu0 0.0
    %1243 = vmatpush1.msra.mxu0 0.0
    %1244 = vmatprep.subr.mxu0 0.0
    %1245 = vmatpush1.msra.mxu0 0.0
    %1246 = vmatprep.subr.mxu0 0.0
    %1247 = vmatpush1.msra.mxu0 0.0
    %1248 = vmatprep.subr.mxu0 0.0
    %1249 = vmatpush1.msra.mxu0 0.0
    %1250 = vmatprep.subr.mxu0 0.0
    %1251 = vmatpush1.msra.mxu0 0.0
    %1252 = vmatprep.subr.mxu0 0.0
    %1253 = vmatpush1.msra.mxu0 0.0
    %1254 = vmatprep.subr.mxu0 0.0
    %1255 = vmatpush1.msra.mxu0 0.0
    %1256 = vmatprep.subr.mxu0 0.0
    %1257 = vmatpush1.msra.mxu0 0.0
    %1258 = vmatprep.subr.mxu0 0.0
    %1259 = vmatpush1.msra.mxu0 0.0
    %1260 = vmatprep.subr.mxu0 0.0
    %1261 = vmatpush1.msra.mxu0 0.0
    %1262 = vmatprep.subr.mxu0 0.0
    %1263 = vmatpush1.msra.mxu0 0.0
    %1264 = vmatprep.subr.mxu0 0.0
    %1265 = vmatpush1.msra.mxu0 0.0
    %1266 = vmatprep.subr.mxu0 0.0
    %1267 = vmatpush1.msra.mxu0 0.0
    %1268 = vmatprep.subr.mxu0 0.0
    %1269 = vmatpush1.msra.mxu0 0.0
    %1270 = vmatprep.subr.mxu0 0.0
    %1271 = vmatpush1.msra.mxu0 0.0
    %1272 = vmatprep.subr.mxu0 0.0
    %1273 = vmatpush1.msra.mxu0 0.0
    %1274 = vmatprep.subr.mxu0 0.0
    %1275 = vmatpush1.msra.mxu0 0.0
    %1276 = vmatprep.subr.mxu0 0.0
    %1277 = vmatpush1.msra.mxu0 0.0
    %1278 = vmatprep.subr.mxu0 0.0
    %1279 = vmatpush1.msra.mxu0 0.0
    %1280 = vmatprep.subr.mxu0 0.0
    %1281 = vmatpush1.msra.mxu0 0.0
    %1282 = vmatprep.subr.mxu0 0.0
    %1283 = vmatpush1.msra.mxu0 0.0
    %1284 = vmatprep.subr.mxu0 0.0
    %1285 = vmatpush1.msra.mxu0 0.0
    %1286 = vmatprep.subr.mxu0 0.0
    %1287 = vmatpush1.msra.mxu0 0.0
    %1288 = vmatprep.subr.mxu0 0.0
    %1289 = vmatpush1.msra.mxu0 0.0
    %1290 = vmatprep.subr.mxu0 0.0
    %1291 = vmatpush1.msra.mxu0 0.0
    %1292 = vmatprep.mubr.f32.mxu0 0.0
    %1293 = vmatmul.mubr.f32.gmra.mrb[0].mxu0 %v1223
    %v1294 = vpop.f32.mrb[0].mxu0
    %v1295 = vadd.f32 0.0, %v1294
    %v1296 = vpop.f32.mrb[0].mxu0
    %1297 = vmatprep.mubr.f32.mxu0 0.0
    %1298 = vmatmul.mubr.f32.gmra.mrb[0].mxu0 %v1226
    %v1299 = vpop.f32.mrb[0].mxu0
    %v1300 = vadd.f32 0.0, %v1299
    %v1301 = vpop.f32.mrb[0].mxu0
    %1302 = vdwg.mxu0
    %vm1303 = vcmask 105472
    %1304 = vst.msk [vmem:[%s3] sm:$0xff] %vm1303, %v728
    %vm1305 = vcmask 102400
    %1306 = vst.msk [vmem:[%s3 + $0x8] sm:$0x1f] %vm1305, %v733
    %1307 = vst.msk [vmem:[%s3 + $0x10] sm:$0xff] %vm1303, %v809
    %1308 = vst.msk [vmem:[%s3 + $0x18] sm:$0x1f] %vm1305, %v814
    %1309 = vst.msk [vmem:[%s3 + $0x20] sm:$0xff] %vm1303, %v890
    %1310 = vst.msk [vmem:[%s3 + $0x28] sm:$0x1f] %vm1305, %v895
    %1311 = vst.msk [vmem:[%s3 + $0x30] sm:$0xff] %vm1303, %v971
    %1312 = vst.msk [vmem:[%s3 + $0x38] sm:$0x1f] %vm1305, %v976
    %1313 = vst.msk [vmem:[%s3 + $0x40] sm:$0xff] %vm1303, %v1052
    %1314 = vst.msk [vmem:[%s3 + $0x48] sm:$0x1f] %vm1305, %v1057
    %1315 = vst.msk [vmem:[%s3 + $0x50] sm:$0xff] %vm1303, %v1133
    %1316 = vst.msk [vmem:[%s3 + $0x58] sm:$0x1f] %vm1305, %v1138
    %1317 = vst.msk [vmem:[%s3 + $0x60] sm:$0xff] %vm1303, %v1214
    %1318 = vst.msk [vmem:[%s3 + $0x68] sm:$0x1f] %vm1305, %v1219
    %1319 = vst.msk [vmem:[%s3 + $0x70] sm:$0xff] %vm1303, %v1295
    %1320 = vst.msk [vmem:[%s3 + $0x78] sm:$0x1f] %vm1305, %v1300
    // Predicated region
    $region18: #{_resize_pallas.1} parent=1 // pred_check
      _
    $region19: #{_resize_pallas.1} parent=1 // pred_check_branch
      %1322 = sbr.rel (0) target = $region21
    $region20: #{_resize_pallas.1} parent=1 // pred_region
      _
    $region21: #{_resize_pallas.1} parent=1 // pred_fallthru
      _
    // Predicated region
    $region22: #{_resize_pallas.1} parent=1 // pred_check
      _
    $region23: #{_resize_pallas.1} parent=1 // pred_check_branch
      %1324 = sbr.rel (0) target = $region25
    $region24: #{_resize_pallas.1} parent=1 // pred_region
      _
    $region25: #{_resize_pallas.1} parent=1 // pred_fallthru
      _
    %1325 = vsyncpa [#allocation3], 1

</llo_original>
